<compile_context>
chip_gen: v7x
topology: tpu7x:2x2x1
jax: 0.10.0
libtpu: 0.0.40
codegen_flags: <defaults>
</compile_context>

<pallas_src>
import functools
import types

import jax
import jax.numpy as jnp
from jax.experimental import pallas as pl
from jax.experimental.pallas import tpu as pltpu


# ----------------------------- Pallas kernels -----------------------------

def _trunk(prop_ref, task_ref, img_refs, wl_ref, bl_ref, wq_ref, wimg_refs,
           bf_ref, wh_ref, bh_ref):
    """Fused surrogate trunk, fully VMEM-resident (bf16 in, f32 accumulate).

    task_emb = task @ W_lang + b_lang
    h        = tanh(prop @ W_qpos + sum_cam mean_S(img_cam) @ W_img_cam
                    + b_feat + task_emb)
    heads    = h @ W_head + b_head
    """
    task_emb = (jnp.dot(task_ref[...], wl_ref[...],
                        preferred_element_type=jnp.float32) + bl_ref[...])
    acc = jnp.dot(prop_ref[...], wq_ref[...],
                  preferred_element_type=jnp.float32)
    for img_ref, wi_ref in zip(img_refs, wimg_refs):
        # per-camera spatial mean pool on the VPU/XLU (f32 reduce), then a
        # small (B, ch) x (ch, H) projection on the MXU.
        pooled = jnp.mean(img_ref[...].astype(jnp.float32), axis=-1)  # (B, ch)
        acc = acc + jnp.dot(pooled.astype(wi_ref.dtype), wi_ref[...],
                            preferred_element_type=jnp.float32)
    h = jnp.tanh(acc + bf_ref[...] + task_emb)                        # f32
    heads = (jnp.dot(h.astype(wh_ref.dtype), wh_ref[...],
                     preferred_element_type=jnp.float32) + bh_ref[...])
    return heads


def _act_train_kernel(*refs, n_img, latent, n_act, kl_weight):
    prop_ref, task_ref, act_ref = refs[0:3]
    img_refs = refs[3:3 + n_img]
    wl_ref, bl_ref, wq_ref = refs[3 + n_img:6 + n_img]
    wimg_refs = refs[6 + n_img:6 + 2 * n_img]
    bf_ref, wh_ref, bh_ref = refs[6 + 2 * n_img:9 + 2 * n_img]
    stats_ref = refs[9 + 2 * n_img]

    heads = _trunk(prop_ref, task_ref, img_refs, wl_ref, bl_ref, wq_ref,
                   wimg_refs, bf_ref, wh_ref, bh_ref)
    # head layout: [actions (Q*A) | mu (L) | logvar (L) | is_pad (Q, unused)]
    pred = heads[:, :n_act]
    mu = heads[:, n_act:n_act + latent]
    logvar = heads[:, n_act + latent:n_act + 2 * latent]

    # total_kld = klds.sum(1).mean(0)   (only the term the loss uses)
    klds = -0.5 * (1.0 + logvar - mu * mu - jnp.exp(logvar))          # (B, L)
    kl_11 = jnp.mean(jnp.sum(klds, axis=1, keepdims=True),
                     axis=0, keepdims=True)                           # (1, 1)

    # Reference: F.l1_loss(actions, pred, reduction='none').mean()  (unmasked)
    diff = jnp.abs(act_ref[...] - pred)                               # (B, Q*A)
    l1_11 = jnp.mean(jnp.mean(diff, axis=1, keepdims=True),
                     axis=0, keepdims=True)                           # (1, 1)
    total_11 = l1_11 + kl_weight * kl_11

    # Build the stats row in registers and write it with a single store.
    lane = jax.lax.broadcasted_iota(jnp.int32, stats_ref.shape, 1)
    stats_ref[...] = (jnp.where(lane == 0, l1_11, 0.0)
                      + jnp.where(lane == 1, kl_11, 0.0)
                      + jnp.where(lane == 2, total_11, 0.0))


def _act_infer_kernel(*refs, n_img):
    prop_ref, task_ref = refs[0:2]
    img_refs = refs[2:2 + n_img]
    wl_ref, bl_ref, wq_ref = refs[2 + n_img:5 + n_img]
    wimg_refs = refs[5 + n_img:5 + 2 * n_img]
    bf_ref, wh_ref, bh_ref = refs[5 + 2 * n_img:8 + 2 * n_img]
    pred_ref = refs[8 + 2 * n_img]
    # w_head/b_head are pre-sliced to the action columns by the caller.
    heads = _trunk(prop_ref, task_ref, img_refs, wl_ref, bl_ref, wq_ref,
                   wimg_refs, bf_ref, wh_ref, bh_ref)
    pred_ref[...] = heads.astype(pred_ref.dtype)


def _vmem_spec(shape):
    zeros = (0,) * len(shape)
    return pl.BlockSpec(shape, lambda i, _z=zeros: _z)


def act_forward_train(prop, task, act2d, imgs, w_lang, b_lang, w_qpos,
                      w_imgs, b_feat, w_head, b_head,
                      *, latent, n_act, kl_weight):
    """Single fused pallas_call: trunk + KL + L1 + total loss (stats row)."""
    n_img = len(imgs)
    args = ((prop, task, act2d) + tuple(imgs)
            + (w_lang, b_lang, w_qpos) + tuple(w_imgs)
            + (b_feat, w_head, b_head))
    kernel = functools.partial(_act_train_kernel, n_img=n_img, latent=latent,
                               n_act=n_act, kl_weight=float(kl_weight))
    return pl.pallas_call(
        kernel,
        out_shape=jax.ShapeDtypeStruct((1, 8), jnp.float32),
        grid=(1,),
        in_specs=[_vmem_spec(x.shape) for x in args],
        out_specs=_vmem_spec((1, 8)),
        compiler_params=pltpu.CompilerParams(
            dimension_semantics=("arbitrary",)),
    )(*args)


def act_forward_infer(prop, task, imgs, w_lang, b_lang, w_qpos, w_imgs,
                      b_feat, w_head, b_head):
    """Single fused pallas_call: trunk only, action head only."""
    n_img = len(imgs)
    B = prop.shape[0]
    n_act = w_head.shape[1]
    args = ((prop, task) + tuple(imgs)
            + (w_lang, b_lang, w_qpos) + tuple(w_imgs)
            + (b_feat, w_head, b_head))
    kernel = functools.partial(_act_infer_kernel, n_img=n_img)
    return pl.pallas_call(
        kernel,
        out_shape=jax.ShapeDtypeStruct((B, n_act), jnp.float32),
        grid=(1,),
        in_specs=[_vmem_spec(x.shape) for x in args],
        out_specs=_vmem_spec((B, n_act)),
        compiler_params=pltpu.CompilerParams(
            dimension_semantics=("arbitrary",)),
    )(*args)


# ------------------------- jitted forward bodies --------------------------

def _split_images(w_img, imgs):
    """Per-camera-tensor (B, ch, S) views + matching slices of w_img."""
    img_list, wimg_list = [], []
    off = 0
    for im in imgs:
        B, ncam_i, C, H, W = im.shape
        ch = ncam_i * C
        img_list.append(im.reshape(B, ch, H * W).astype(jnp.bfloat16))
        wimg_list.append(w_img[off:off + ch, :])
        off += ch
    return tuple(img_list), tuple(wimg_list)


def _train_impl(params, prop, imgs, task, actions, *, latent, n_act,
                kl_weight):
    B = prop.shape[0]
    img_list, wimg_list = _split_images(params["w_img"], imgs)
    stats = act_forward_train(
        prop.astype(jnp.bfloat16), task.astype(jnp.bfloat16),
        actions.reshape(B, -1).astype(jnp.float32), img_list,
        params["w_lang"], params["b_lang"], params["w_qpos"], wimg_list,
        params["b_feat"], params["w_head"], params["b_head"],
        latent=latent, n_act=n_act, kl_weight=kl_weight)
    return {"l1": stats[0, 0], "kl": stats[0, 1], "loss": stats[0, 2]}


def _infer_impl(params, prop, imgs, task, *, num_queries, act_dim, n_act):
    B = prop.shape[0]
    img_list, wimg_list = _split_images(params["w_img"], imgs)
    # inference never uses mu / logvar / is_pad: slice the fused head first
    w_head_a = params["w_head"][:, :n_act]
    b_head_a = params["b_head"][:, :n_act]
    pred = act_forward_infer(
        prop.astype(jnp.bfloat16), task.astype(jnp.bfloat16), img_list,
        params["w_lang"], params["b_lang"], params["w_qpos"], wimg_list,
        params["b_feat"], w_head_a, b_head_a)
    return pred.reshape(B, num_queries, act_dim)


# --------------------------- ACTPolicy wrapper ----------------------------

class ACTPolicyPallas:
    """JAX/Pallas re-implementation of ACTPolicy.forward."""

    def __init__(self, cfg, kl_weight=10, lang_dim=64, latent_dim=16,
                 key=jax.random.PRNGKey(42)):
        self.cfg = cfg
        self.num_queries = cfg.num_queries
        self.kl_weight = float(kl_weight)
        self.act_dim = cfg.action_dim
        self.hidden_dim = cfg.hidden_dim
        self.latent_dim = latent_dim
        self.ncam = len(cfg.camera_names)

        H = cfg.hidden_dim
        img_ch = self.ncam * 3                    # NCHW channels per camera
        self.n_act = cfg.num_queries * cfg.action_dim
        n_head = self.n_act + 2 * latent_dim + cfg.num_queries

        def init(k, shape):
            return 0.02 * jax.random.normal(k, shape, jnp.float32)

        ks = jax.random.split(key, 8)
        # weights in bf16 (MXU operands), biases in f32
        self.params = {
            # lang_proj (matches the reference nn.Linear(lang_dim, hidden_dim))
            "w_lang": init(ks[0], (lang_dim, H)).astype(jnp.bfloat16),
            "b_lang": init(ks[1], (1, H)),
            "w_qpos": init(ks[2], (cfg.state_dim, H)).astype(jnp.bfloat16),
            "w_img": init(ks[3], (img_ch, H)).astype(jnp.bfloat16),
            "b_feat": init(ks[4], (1, H)) + init(ks[5], (1, H)),
            # fused heads: [actions (Q*A) | mu (L) | logvar (L) | is_pad (Q)]
            "w_head": init(ks[6], (H, n_head)).astype(jnp.bfloat16),
            "b_head": init(ks[7], (1, n_head)),
        }

        # whole forward (feature prep + fused Pallas kernel) in one dispatch
        self._train_jit = jax.jit(functools.partial(
            _train_impl, latent=self.latent_dim, n_act=self.n_act,
            kl_weight=self.kl_weight))
        self._infer_jit = jax.jit(functools.partial(
            _infer_impl, num_queries=self.num_queries, act_dim=self.act_dim,
            n_act=self.n_act))

    def forward(self, data, is_training=True):
        prop = jnp.asarray(data["proprioceptive"], jnp.float32)
        if prop.ndim == 3:
            prop = prop[:, 0, :]                                   # squeeze(1)

        # camera tensors stay separate all the way into the kernel
        imgs = [jnp.asarray(data["pixels"], jnp.float32)]
        if "pixels_egocentric" in data:
            imgs.append(jnp.asarray(data["pixels_egocentric"], jnp.float32))

        task = jnp.asarray(data["task_emb"], jnp.float32)
        if task.ndim == 3:
            task = task[:, 0, :]   # slice the single timestep BEFORE lang_proj

        if is_training:
            pad_mask = jnp.asarray(data["action_padding_mask"])
            if pad_mask.ndim == 3:
                pad_mask = pad_mask[:, 0, :]                       # squeeze(1)
            actions = jnp.asarray(data["actions"], jnp.float32)
            if actions.shape[1] != pad_mask.shape[1]:
                raise ValueError(
                    f"Actions shape {actions.shape} and padding mask shape "
                    f"{pad_mask.shape} must have same sequence length")
            # Reference loss is an unmasked mean; pad_mask is only validated.
            return self._train_jit(self.params, prop, tuple(imgs), task,
                                   actions)
        else:
            return self._infer_jit(self.params, prop, tuple(imgs), task)


# --------------------------------- main -----------------------------------

if __name__ == "__main__":
    cfg = types.SimpleNamespace(
        hidden_dim=32,
        state_dim=8,
        action_dim=4,
        num_queries=8,
        camera_names=["agentview", "eye_in_hand"],
        max_episode_len=16,
    )
    B, C, H, W = 2, 3, 16, 16
    lang_dim = 64

    policy = ACTPolicyPallas(cfg, kl_weight=10, lang_dim=lang_dim,
                             latent_dim=16, key=jax.random.PRNGKey(42))

    k = jax.random.PRNGKey(0)
    k1, k2, k3, k4, k5 = jax.random.split(k, 5)
    data = {
        "pixels": jax.random.normal(k1, (B, 1, C, H, W), jnp.float32),
        "pixels_egocentric": jax.random.normal(k2, (B, 1, C, H, W), jnp.float32),
        "proprioceptive": jax.random.normal(k3, (B, 1, cfg.state_dim), jnp.float32),
        "task_emb": jax.random.normal(k4, (B, 1, lang_dim), jnp.float32),
        "actions": jax.random.normal(k5, (B, cfg.num_queries, cfg.action_dim),
                                     jnp.float32),
        "action_padding_mask": jnp.zeros((B, 1, cfg.num_queries), jnp.bool_),
    }

    # training forward -> loss dict (single fused Pallas kernel, jitted e2e)
    loss_dict = policy.forward(data, is_training=True)
    jax.block_until_ready(loss_dict["loss"])

    # inference forward -> predicted action chunk (B, num_queries, action_dim)
    pred = policy.forward(data, is_training=False)
    jax.block_until_ready(pred)

    assert pred.shape == (B, cfg.num_queries, cfg.action_dim)
    assert loss_dict["loss"].shape == ()
    assert loss_dict["l1"].shape == () and loss_dict["kl"].shape == ()
    assert bool(jnp.isfinite(loss_dict["loss"]))
    print("KERNEL_OK")
</pallas_src>

<mosaic_0001>
module attributes {stable_mosaic.version = 11 : i64} {
  func.func @_act_train_kernel(%arg0: i32, %arg1: memref<2x8xbf16, #tpu.memory_space<vmem>>, %arg2: memref<2x64xbf16, #tpu.memory_space<vmem>>, %arg3: memref<2x32xf32, #tpu.memory_space<vmem>>, %arg4: memref<2x3x256xbf16, #tpu.memory_space<vmem>>, %arg5: memref<2x3x256xbf16, #tpu.memory_space<vmem>>, %arg6: memref<64x32xbf16, #tpu.memory_space<vmem>>, %arg7: memref<1x32xf32, #tpu.memory_space<vmem>>, %arg8: memref<8x32xbf16, #tpu.memory_space<vmem>>, %arg9: memref<3x32xbf16, #tpu.memory_space<vmem>>, %arg10: memref<3x32xbf16, #tpu.memory_space<vmem>>, %arg11: memref<1x32xf32, #tpu.memory_space<vmem>>, %arg12: memref<32x72xbf16, #tpu.memory_space<vmem>>, %arg13: memref<1x72xf32, #tpu.memory_space<vmem>>, %arg14: memref<1x8xf32, #tpu.memory_space<vmem>>) attributes {dimension_semantics = [#tpu.dimension_semantics<arbitrary>], iteration_bounds = array<i64: 1>, scalar_prefetch = 0 : i64, scratch_operands = 0 : i64, tpu.core_type = #tpu.core_type<tc>, window_params = [{pipeline_mode = #tpu.pipeline_mode<synchronous>, transform_indices = @transform_0, window_bounds = array<i64: 2, 8>}, {pipeline_mode = #tpu.pipeline_mode<synchronous>, transform_indices = @transform_1, window_bounds = array<i64: 2, 64>}, {pipeline_mode = #tpu.pipeline_mode<synchronous>, transform_indices = @transform_2, window_bounds = array<i64: 2, 32>}, {pipeline_mode = #tpu.pipeline_mode<synchronous>, transform_indices = @transform_3, window_bounds = array<i64: 2, 3, 256>}, {pipeline_mode = #tpu.pipeline_mode<synchronous>, transform_indices = @transform_4, window_bounds = array<i64: 2, 3, 256>}, {pipeline_mode = #tpu.pipeline_mode<synchronous>, transform_indices = @transform_5, window_bounds = array<i64: 64, 32>}, {pipeline_mode = #tpu.pipeline_mode<synchronous>, transform_indices = @transform_6, window_bounds = array<i64: 1, 32>}, {pipeline_mode = #tpu.pipeline_mode<synchronous>, transform_indices = @transform_7, window_bounds = array<i64: 8, 32>}, {pipeline_mode = #tpu.pipeline_mode<synchronous>, transform_indices = @transform_8, window_bounds = array<i64: 3, 32>}, {pipeline_mode = #tpu.pipeline_mode<synchronous>, transform_indices = @transform_9, window_bounds = array<i64: 3, 32>}, {pipeline_mode = #tpu.pipeline_mode<synchronous>, transform_indices = @transform_10, window_bounds = array<i64: 1, 32>}, {pipeline_mode = #tpu.pipeline_mode<synchronous>, transform_indices = @transform_11, window_bounds = array<i64: 32, 72>}, {pipeline_mode = #tpu.pipeline_mode<synchronous>, transform_indices = @transform_12, window_bounds = array<i64: 1, 72>}, {pipeline_mode = #tpu.pipeline_mode<synchronous>, transform_indices = @transform_13, window_bounds = array<i64: 1, 8>}]} {
    %c0 = arith.constant 0 : index
    %c0_0 = arith.constant 0 : index
    %0 = vector.load %arg2[%c0, %c0_0] : memref<2x64xbf16, #tpu.memory_space<vmem>>, vector<2x64xbf16>
    %c0_1 = arith.constant 0 : index
    %c0_2 = arith.constant 0 : index
    %1 = vector.load %arg6[%c0_1, %c0_2] : memref<64x32xbf16, #tpu.memory_space<vmem>>, vector<64x32xbf16>
    %cst = arith.constant dense<0.000000e+00> : vector<2x32xf32>
    %2 = tpu.matmul %0, %1, %cst {dimension_numbers = #tpu.dot_dimension_numbers<[1], [0], [0], [1], [0, 0, 1, 1], [], []>} : vector<2x64xbf16>, vector<64x32xbf16>, vector<2x32xf32> -> vector<2x32xf32>
    %c0_3 = arith.constant 0 : index
    %c0_4 = arith.constant 0 : index
    %3 = vector.load %arg7[%c0_3, %c0_4] : memref<1x32xf32, #tpu.memory_space<vmem>>, vector<1x32xf32>
    %4 = vector.broadcast %3 : vector<1x32xf32> to vector<2x32xf32>
    %5 = arith.addf %2, %4 : vector<2x32xf32>
    %c0_5 = arith.constant 0 : index
    %c0_6 = arith.constant 0 : index
    %6 = vector.load %arg1[%c0_5, %c0_6] : memref<2x8xbf16, #tpu.memory_space<vmem>>, vector<2x8xbf16>
    %c0_7 = arith.constant 0 : index
    %c0_8 = arith.constant 0 : index
    %7 = vector.load %arg8[%c0_7, %c0_8] : memref<8x32xbf16, #tpu.memory_space<vmem>>, vector<8x32xbf16>
    %cst_9 = arith.constant dense<0.000000e+00> : vector<2x32xf32>
    %8 = tpu.matmul %6, %7, %cst_9 {dimension_numbers = #tpu.dot_dimension_numbers<[1], [0], [0], [1], [0, 0, 1, 1], [], []>} : vector<2x8xbf16>, vector<8x32xbf16>, vector<2x32xf32> -> vector<2x32xf32>
    %c0_10 = arith.constant 0 : index
    %c0_11 = arith.constant 0 : index
    %c0_12 = arith.constant 0 : index
    %9 = vector.load %arg4[%c0_10, %c0_11, %c0_12] : memref<2x3x256xbf16, #tpu.memory_space<vmem>>, vector<2x3x256xbf16>
    %10 = arith.extf %9 : vector<2x3x256xbf16> to vector<2x3x256xf32>
    %cst_13 = arith.constant dense<0.000000e+00> : vector<2x3xf32>
    %11 = vector.multi_reduction <add>, %10, %cst_13 [2] : vector<2x3x256xf32> to vector<2x3xf32>
    %cst_14 = arith.constant 2.560000e+02 : f32
    %12 = vector.broadcast %cst_14 : f32 to vector<2x3xf32>
    %13 = arith.divf %11, %12 : vector<2x3xf32>
    %14 = arith.truncf %13 : vector<2x3xf32> to vector<2x3xbf16>
    %c0_15 = arith.constant 0 : index
    %c0_16 = arith.constant 0 : index
    %15 = vector.load %arg9[%c0_15, %c0_16] : memref<3x32xbf16, #tpu.memory_space<vmem>>, vector<3x32xbf16>
    %cst_17 = arith.constant dense<0.000000e+00> : vector<2x32xf32>
    %16 = tpu.matmul %14, %15, %cst_17 {dimension_numbers = #tpu.dot_dimension_numbers<[1], [0], [0], [1], [0, 0, 1, 1], [], []>} : vector<2x3xbf16>, vector<3x32xbf16>, vector<2x32xf32> -> vector<2x32xf32>
    %17 = arith.addf %8, %16 : vector<2x32xf32>
    %c0_18 = arith.constant 0 : index
    %c0_19 = arith.constant 0 : index
    %c0_20 = arith.constant 0 : index
    %18 = vector.load %arg5[%c0_18, %c0_19, %c0_20] : memref<2x3x256xbf16, #tpu.memory_space<vmem>>, vector<2x3x256xbf16>
    %19 = arith.extf %18 : vector<2x3x256xbf16> to vector<2x3x256xf32>
    %cst_21 = arith.constant dense<0.000000e+00> : vector<2x3xf32>
    %20 = vector.multi_reduction <add>, %19, %cst_21 [2] : vector<2x3x256xf32> to vector<2x3xf32>
    %cst_22 = arith.constant 2.560000e+02 : f32
    %21 = vector.broadcast %cst_22 : f32 to vector<2x3xf32>
    %22 = arith.divf %20, %21 : vector<2x3xf32>
    %23 = arith.truncf %22 : vector<2x3xf32> to vector<2x3xbf16>
    %c0_23 = arith.constant 0 : index
    %c0_24 = arith.constant 0 : index
    %24 = vector.load %arg10[%c0_23, %c0_24] : memref<3x32xbf16, #tpu.memory_space<vmem>>, vector<3x32xbf16>
    %cst_25 = arith.constant dense<0.000000e+00> : vector<2x32xf32>
    %25 = tpu.matmul %23, %24, %cst_25 {dimension_numbers = #tpu.dot_dimension_numbers<[1], [0], [0], [1], [0, 0, 1, 1], [], []>} : vector<2x3xbf16>, vector<3x32xbf16>, vector<2x32xf32> -> vector<2x32xf32>
    %26 = arith.addf %17, %25 : vector<2x32xf32>
    %c0_26 = arith.constant 0 : index
    %c0_27 = arith.constant 0 : index
    %27 = vector.load %arg11[%c0_26, %c0_27] : memref<1x32xf32, #tpu.memory_space<vmem>>, vector<1x32xf32>
    %28 = vector.broadcast %27 : vector<1x32xf32> to vector<2x32xf32>
    %29 = arith.addf %26, %28 : vector<2x32xf32>
    %30 = arith.addf %29, %5 : vector<2x32xf32>
    %31 = math.tanh %30 : vector<2x32xf32>
    %32 = arith.truncf %31 : vector<2x32xf32> to vector<2x32xbf16>
    %c0_28 = arith.constant 0 : index
    %c0_29 = arith.constant 0 : index
    %33 = vector.load %arg12[%c0_28, %c0_29] : memref<32x72xbf16, #tpu.memory_space<vmem>>, vector<32x72xbf16>
    %cst_30 = arith.constant dense<0.000000e+00> : vector<2x72xf32>
    %34 = tpu.matmul %32, %33, %cst_30 {dimension_numbers = #tpu.dot_dimension_numbers<[1], [0], [0], [1], [0, 0, 1, 1], [], []>} : vector<2x32xbf16>, vector<32x72xbf16>, vector<2x72xf32> -> vector<2x72xf32>
    %c0_31 = arith.constant 0 : index
    %c0_32 = arith.constant 0 : index
    %35 = vector.load %arg13[%c0_31, %c0_32] : memref<1x72xf32, #tpu.memory_space<vmem>>, vector<1x72xf32>
    %36 = vector.broadcast %35 : vector<1x72xf32> to vector<2x72xf32>
    %37 = arith.addf %34, %36 : vector<2x72xf32>
    %38 = vector.extract_strided_slice %37 {offsets = [0, 0], sizes = [2, 32], strides = [1, 1]} : vector<2x72xf32> to vector<2x32xf32>
    %39 = vector.extract_strided_slice %37 {offsets = [0, 32], sizes = [2, 16], strides = [1, 1]} : vector<2x72xf32> to vector<2x16xf32>
    %40 = vector.extract_strided_slice %37 {offsets = [0, 48], sizes = [2, 16], strides = [1, 1]} : vector<2x72xf32> to vector<2x16xf32>
    %cst_33 = arith.constant 1.000000e+00 : f32
    %41 = vector.broadcast %cst_33 : f32 to vector<2x16xf32>
    %42 = arith.addf %41, %40 : vector<2x16xf32>
    %43 = arith.mulf %39, %39 : vector<2x16xf32>
    %44 = arith.subf %42, %43 : vector<2x16xf32>
    %45 = math.exp %40 : vector<2x16xf32>
    %46 = arith.subf %44, %45 : vector<2x16xf32>
    %cst_34 = arith.constant -5.000000e-01 : f32
    %47 = vector.broadcast %cst_34 : f32 to vector<2x16xf32>
    %48 = arith.mulf %47, %46 : vector<2x16xf32>
    %cst_35 = arith.constant dense<0.000000e+00> : vector<2xf32>
    %49 = vector.multi_reduction <add>, %48, %cst_35 [1] : vector<2x16xf32> to vector<2xf32>
    %50 = vector.shape_cast %49 : vector<2xf32> to vector<2x1xf32>
    %cst_36 = arith.constant dense<0.000000e+00> : vector<1xf32>
    %51 = vector.multi_reduction <add>, %50, %cst_36 [0] : vector<2x1xf32> to vector<1xf32>
    %52 = vector.shape_cast %51 : vector<1xf32> to vector<1x1xf32>
    %cst_37 = arith.constant 2.000000e+00 : f32
    %53 = vector.broadcast %cst_37 : f32 to vector<1x1xf32>
    %54 = arith.divf %52, %53 : vector<1x1xf32>
    %c0_38 = arith.constant 0 : index
    %c0_39 = arith.constant 0 : index
    %55 = vector.load %arg3[%c0_38, %c0_39] : memref<2x32xf32, #tpu.memory_space<vmem>>, vector<2x32xf32>
    %56 = arith.subf %55, %38 : vector<2x32xf32>
    %57 = math.absf %56 : vector<2x32xf32>
    %cst_40 = arith.constant dense<0.000000e+00> : vector<2xf32>
    %58 = vector.multi_reduction <add>, %57, %cst_40 [1] : vector<2x32xf32> to vector<2xf32>
    %59 = vector.shape_cast %58 : vector<2xf32> to vector<2x1xf32>
    %cst_41 = arith.constant 3.200000e+01 : f32
    %60 = vector.broadcast %cst_41 : f32 to vector<2x1xf32>
    %61 = arith.divf %59, %60 : vector<2x1xf32>
    %cst_42 = arith.constant dense<0.000000e+00> : vector<1xf32>
    %62 = vector.multi_reduction <add>, %61, %cst_42 [0] : vector<2x1xf32> to vector<1xf32>
    %63 = vector.shape_cast %62 : vector<1xf32> to vector<1x1xf32>
    %cst_43 = arith.constant 2.000000e+00 : f32
    %64 = vector.broadcast %cst_43 : f32 to vector<1x1xf32>
    %65 = arith.divf %63, %64 : vector<1x1xf32>
    %cst_44 = arith.constant 1.000000e+01 : f32
    %66 = vector.broadcast %cst_44 : f32 to vector<1x1xf32>
    %67 = arith.mulf %66, %54 : vector<1x1xf32>
    %68 = arith.addf %65, %67 : vector<1x1xf32>
    %69 = tpu.iota {dimensions = array<i32: 1>} : vector<1x8xi32>
    %c0_i32 = arith.constant 0 : i32
    %70 = vector.broadcast %c0_i32 : i32 to vector<1x8xi32>
    %71 = arith.cmpi eq, %69, %70 : vector<1x8xi32>
    %cst_45 = arith.constant 0.000000e+00 : f32
    %72 = vector.shape_cast %65 : vector<1x1xf32> to vector<1x1xf32>
    %73 = vector.broadcast %72 : vector<1x1xf32> to vector<1x8xf32>
    %74 = vector.broadcast %cst_45 : f32 to vector<1x8xf32>
    %75 = arith.select %71, %73, %74 : vector<1x8xi1>, vector<1x8xf32>
    %c1_i32 = arith.constant 1 : i32
    %76 = vector.broadcast %c1_i32 : i32 to vector<1x8xi32>
    %77 = arith.cmpi eq, %69, %76 : vector<1x8xi32>
    %cst_46 = arith.constant 0.000000e+00 : f32
    %78 = vector.shape_cast %54 : vector<1x1xf32> to vector<1x1xf32>
    %79 = vector.broadcast %78 : vector<1x1xf32> to vector<1x8xf32>
    %80 = vector.broadcast %cst_46 : f32 to vector<1x8xf32>
    %81 = arith.select %77, %79, %80 : vector<1x8xi1>, vector<1x8xf32>
    %82 = arith.addf %75, %81 : vector<1x8xf32>
    %c2_i32 = arith.constant 2 : i32
    %83 = vector.broadcast %c2_i32 : i32 to vector<1x8xi32>
    %84 = arith.cmpi eq, %69, %83 : vector<1x8xi32>
    %cst_47 = arith.constant 0.000000e+00 : f32
    %85 = vector.shape_cast %68 : vector<1x1xf32> to vector<1x1xf32>
    %86 = vector.broadcast %85 : vector<1x1xf32> to vector<1x8xf32>
    %87 = vector.broadcast %cst_47 : f32 to vector<1x8xf32>
    %88 = arith.select %84, %86, %87 : vector<1x8xi1>, vector<1x8xf32>
    %89 = arith.addf %82, %88 : vector<1x8xf32>
    %c0_48 = arith.constant 0 : index
    %c0_49 = arith.constant 0 : index
    %90 = vector.load %arg14[%c0_48, %c0_49] : memref<1x8xf32, #tpu.memory_space<vmem>>, vector<1x8xf32>
    tpu.vector_store %arg14[%c0_48, %c0_49], %89 {strides = array<i32>} : memref<1x8xf32, #tpu.memory_space<vmem>>, vector<1x8xf32>,
    return
  }
  func.func @transform_0(%arg0: i32) -> (i32, i32) {
    %c0_i32 = arith.constant 0 : i32
    %c0_i32_0 = arith.constant 0 : i32
    %c0_i32_1 = arith.constant 0 : i32
    return %c0_i32, %c0_i32_0 : i32, i32
  }
  func.func @transform_1(%arg0: i32) -> (i32, i32) {
    %c0_i32 = arith.constant 0 : i32
    %c0_i32_0 = arith.constant 0 : i32
    %c0_i32_1 = arith.constant 0 : i32
    return %c0_i32, %c0_i32_0 : i32, i32
  }
  func.func @transform_2(%arg0: i32) -> (i32, i32) {
    %c0_i32 = arith.constant 0 : i32
    %c0_i32_0 = arith.constant 0 : i32
    %c0_i32_1 = arith.constant 0 : i32
    return %c0_i32, %c0_i32_0 : i32, i32
  }
  func.func @transform_3(%arg0: i32) -> (i32, i32, i32) {
    %c0_i32 = arith.constant 0 : i32
    %c0_i32_0 = arith.constant 0 : i32
    %c0_i32_1 = arith.constant 0 : i32
    %c0_i32_2 = arith.constant 0 : i32
    return %c0_i32, %c0_i32_0, %c0_i32_1 : i32, i32, i32
  }
  func.func @transform_4(%arg0: i32) -> (i32, i32, i32) {
    %c0_i32 = arith.constant 0 : i32
    %c0_i32_0 = arith.constant 0 : i32
    %c0_i32_1 = arith.constant 0 : i32
    %c0_i32_2 = arith.constant 0 : i32
    return %c0_i32, %c0_i32_0, %c0_i32_1 : i32, i32, i32
  }
  func.func @transform_5(%arg0: i32) -> (i32, i32) {
    %c0_i32 = arith.constant 0 : i32
    %c0_i32_0 = arith.constant 0 : i32
    %c0_i32_1 = arith.constant 0 : i32
    return %c0_i32, %c0_i32_0 : i32, i32
  }
  func.func @transform_6(%arg0: i32) -> (i32, i32) {
    %c0_i32 = arith.constant 0 : i32
    %c0_i32_0 = arith.constant 0 : i32
    %c0_i32_1 = arith.constant 0 : i32
    return %c0_i32, %c0_i32_0 : i32, i32
  }
  func.func @transform_7(%arg0: i32) -> (i32, i32) {
    %c0_i32 = arith.constant 0 : i32
    %c0_i32_0 = arith.constant 0 : i32
    %c0_i32_1 = arith.constant 0 : i32
    return %c0_i32, %c0_i32_0 : i32, i32
  }
  func.func @transform_8(%arg0: i32) -> (i32, i32) {
    %c0_i32 = arith.constant 0 : i32
    %c0_i32_0 = arith.constant 0 : i32
    %c0_i32_1 = arith.constant 0 : i32
    return %c0_i32, %c0_i32_0 : i32, i32
  }
  func.func @transform_9(%arg0: i32) -> (i32, i32) {
    %c0_i32 = arith.constant 0 : i32
    %c0_i32_0 = arith.constant 0 : i32
    %c0_i32_1 = arith.constant 0 : i32
    return %c0_i32, %c0_i32_0 : i32, i32
  }
  func.func @transform_10(%arg0: i32) -> (i32, i32) {
    %c0_i32 = arith.constant 0 : i32
    %c0_i32_0 = arith.constant 0 : i32
    %c0_i32_1 = arith.constant 0 : i32
    return %c0_i32, %c0_i32_0 : i32, i32
  }
  func.func @transform_11(%arg0: i32) -> (i32, i32) {
    %c0_i32 = arith.constant 0 : i32
    %c0_i32_0 = arith.constant 0 : i32
    %c0_i32_1 = arith.constant 0 : i32
    return %c0_i32, %c0_i32_0 : i32, i32
  }
  func.func @transform_12(%arg0: i32) -> (i32, i32) {
    %c0_i32 = arith.constant 0 : i32
    %c0_i32_0 = arith.constant 0 : i32
    %c0_i32_1 = arith.constant 0 : i32
    return %c0_i32, %c0_i32_0 : i32, i32
  }
  func.func @transform_13(%arg0: i32) -> (i32, i32) {
    %c0_i32 = arith.constant 0 : i32
    %c0_i32_0 = arith.constant 0 : i32
    %c0_i32_1 = arith.constant 0 : i32
    return %c0_i32, %c0_i32_0 : i32, i32
  }
}

</mosaic_0001>

<llo_original>
// kernel: _train_impl.1
$region0: #{_train_impl.1}
  #allocation0 [shape = 'u32[]', space=smem, size = 0x4, offset = 0x4, fixed_abs, tag = 'smem constant byte address 0x4 - core index']
  #allocation1 [shape = 'u32[144,128]{1,0:T(1,128)}', space=vmem, size = 0x12000, scoped, tag = 'internal scratch']
  %s0 = inlined_call_operand.vmem [shape: bf16[2,8], index: 0, kind: input, shape index: {}]
  %s1 = inlined_call_operand.vmem [shape: bf16[2,64], index: 1, kind: input, shape index: {}]
  %s2 = inlined_call_operand.vmem [shape: f32[2,32], index: 2, kind: input, shape index: {}]
  %s3 = inlined_call_operand.vmem [shape: bf16[2,3,256], index: 3, kind: input, shape index: {}]
  %s4 = inlined_call_operand.vmem [shape: bf16[2,3,256], index: 4, kind: input, shape index: {}]
  %s5 = inlined_call_operand.vmem [shape: bf16[64,32], index: 5, kind: input, shape index: {}]
  %s6 = inlined_call_operand.vmem [shape: f32[1,32], index: 6, kind: input, shape index: {}]
  %s7 = inlined_call_operand.vmem [shape: bf16[8,32], index: 7, kind: input, shape index: {}]
  %s8 = inlined_call_operand.vmem [shape: bf16[3,32], index: 8, kind: input, shape index: {}]
  %s9 = inlined_call_operand.vmem [shape: bf16[3,32], index: 9, kind: input, shape index: {}]
  %s10 = inlined_call_operand.vmem [shape: f32[1,32], index: 10, kind: input, shape index: {}]
  %s11 = inlined_call_operand.vmem [shape: bf16[32,72], index: 11, kind: input, shape index: {}]
  %s12 = inlined_call_operand.vmem [shape: f32[1,72], index: 12, kind: input, shape index: {}]
  %s13 = inlined_call_operand.vmem [shape: f32[1,8], index: 13, kind: output, shape index: {}]
  %s14 = sld [smem:[#allocation0]]
  $region62: #{_train_impl.1} parent=0
    _
  %s16 = ssub.s32 1, %s14
  %s17 = scalar_select 0, %s16, %s14
  // Predicated region
  $region2: #{_train_impl.1} parent=0 // pred_check
    _
  $region3: #{_train_impl.1} parent=0 // pred_check_branch
    %19 = sbr.rel (0) target = $region5
  $region4: #{_train_impl.1} parent=0 // pred_region
    _
  $region5: #{_train_impl.1} parent=0 // pred_fallthru
    _
  // Predicated region
  $region6: #{_train_impl.1} parent=0 // pred_check
    _
  $region7: #{_train_impl.1} parent=0 // pred_check_branch
    %21 = sbr.rel (0) target = $region9
  $region8: #{_train_impl.1} parent=0 // pred_region
    _
  $region9: #{_train_impl.1} parent=0 // pred_fallthru
    _
  // Predicated region
  $region10: #{_train_impl.1} parent=0 // pred_check
    _
  $region11: #{_train_impl.1} parent=0 // pred_check_branch
    %23 = sbr.rel (0) target = $region13
  $region12: #{_train_impl.1} parent=0 // pred_region
    _
  $region13: #{_train_impl.1} parent=0 // pred_fallthru
    _
  // Predicated region
  $region14: #{_train_impl.1} parent=0 // pred_check
    _
  $region15: #{_train_impl.1} parent=0 // pred_check_branch
    %25 = sbr.rel (0) target = $region17
  $region16: #{_train_impl.1} parent=0 // pred_region
    _
  $region17: #{_train_impl.1} parent=0 // pred_fallthru
    _
  // Predicated region
  $region18: #{_train_impl.1} parent=0 // pred_check
    _
  $region19: #{_train_impl.1} parent=0 // pred_check_branch
    %27 = sbr.rel (0) target = $region21
  $region20: #{_train_impl.1} parent=0 // pred_region
    _
  $region21: #{_train_impl.1} parent=0 // pred_fallthru
    _
  // Predicated region
  $region22: #{_train_impl.1} parent=0 // pred_check
    _
  $region23: #{_train_impl.1} parent=0 // pred_check_branch
    %29 = sbr.rel (0) target = $region25
  $region24: #{_train_impl.1} parent=0 // pred_region
    _
  $region25: #{_train_impl.1} parent=0 // pred_fallthru
    _
  // Predicated region
  $region26: #{_train_impl.1} parent=0 // pred_check
    _
  $region27: #{_train_impl.1} parent=0 // pred_check_branch
    %31 = sbr.rel (0) target = $region29
  $region28: #{_train_impl.1} parent=0 // pred_region
    _
  $region29: #{_train_impl.1} parent=0 // pred_fallthru
    _
  // Predicated region
  $region30: #{_train_impl.1} parent=0 // pred_check
    _
  $region31: #{_train_impl.1} parent=0 // pred_check_branch
    %33 = sbr.rel (0) target = $region33
  $region32: #{_train_impl.1} parent=0 // pred_region
    _
  $region33: #{_train_impl.1} parent=0 // pred_fallthru
    _
  // Predicated region
  $region34: #{_train_impl.1} parent=0 // pred_check
    _
  $region35: #{_train_impl.1} parent=0 // pred_check_branch
    %35 = sbr.rel (0) target = $region37
  $region36: #{_train_impl.1} parent=0 // pred_region
    _
  $region37: #{_train_impl.1} parent=0 // pred_fallthru
    _
  // Predicated region
  $region38: #{_train_impl.1} parent=0 // pred_check
    _
  $region39: #{_train_impl.1} parent=0 // pred_check_branch
    %37 = sbr.rel (0) target = $region41
  $region40: #{_train_impl.1} parent=0 // pred_region
    _
  $region41: #{_train_impl.1} parent=0 // pred_fallthru
    _
  // Predicated region
  $region42: #{_train_impl.1} parent=0 // pred_check
    _
  $region43: #{_train_impl.1} parent=0 // pred_check_branch
    %39 = sbr.rel (0) target = $region45
  $region44: #{_train_impl.1} parent=0 // pred_region
    _
  $region45: #{_train_impl.1} parent=0 // pred_fallthru
    _
  // Predicated region
  $region46: #{_train_impl.1} parent=0 // pred_check
    _
  $region47: #{_train_impl.1} parent=0 // pred_check_branch
    %41 = sbr.rel (0) target = $region49
  $region48: #{_train_impl.1} parent=0 // pred_region
    _
  $region49: #{_train_impl.1} parent=0 // pred_fallthru
    _
  // Predicated region
  $region50: #{_train_impl.1} parent=0 // pred_check
    _
  $region51: #{_train_impl.1} parent=0 // pred_check_branch
    %43 = sbr.rel (0) target = $region53
  $region52: #{_train_impl.1} parent=0 // pred_region
    _
  $region53: #{_train_impl.1} parent=0 // pred_fallthru
    _
  %v45 = vld [vmem:[%s1] sm:$0x1]
  %v46 = vld [vmem:[%s5] sm:$0xf]
  %v47 = vld [vmem:[%s5 + $0x4] sm:$0xf]
  %v48 = vld [vmem:[%s5 + $0x8] sm:$0xf]
  %v49 = vld [vmem:[%s5 + $0xc] sm:$0xf]
  %v50 = vld [vmem:[%s5 + $0x10] sm:$0xf]
  %v51 = vld [vmem:[%s5 + $0x14] sm:$0xf]
  %v52 = vld [vmem:[%s5 + $0x18] sm:$0xf]
  %v53 = vld [vmem:[%s5 + $0x1c] sm:$0xf]
  %v54 = vld [vmem:[%s6] sm:$0x1]
  %v56 = vlaneseq
  %v57 = vshrl.u32 %v56, 7
  %v58 = vsub.s32 0, %v57
  %v59 = vrot.slane %v54, %v58
  %v69 = vunpack.c.l.b16 %v46
  %v70 = vunpack.c.l.b16 %v47
  %v71 = vunpack.c.l.b16 %v48
  %v72 = vunpack.c.l.b16 %v49
  %v73 = vunpack.c.l.b16 %v50
  %v74 = vunpack.c.l.b16 %v51
  %v75 = vunpack.c.l.b16 %v52
  %v76 = vunpack.c.l.b16 %v53
  %v77 = vpack.c.b16 %v70, %v69
  %v78 = vpack.c.b16 %v72, %v71
  %v79 = vpack.c.b16 %v74, %v73
  %v80 = vpack.c.b16 %v76, %v75
  %vm85 = vcmask 523264
  %v87 = vsel %vm85, %v45, 0
  %89 = vmatprep.subr.bf16.mxu0 0
  %90 = vmatpush1.bf16.msra.mxu0 %v77
  %91 = vmatprep.subr.bf16.mxu0 0
  %92 = vmatpush1.bf16.msra.mxu0 %v78
  %93 = vmatprep.subr.bf16.mxu0 0
  %94 = vmatpush1.bf16.msra.mxu0 %v79
  %95 = vmatprep.subr.bf16.mxu0 0
  %96 = vmatpush1.bf16.msra.mxu0 %v80
  %97 = vmatprep.subr.bf16.mxu0 0
  %98 = vmatpush1.bf16.msra.mxu0 0
  %99 = vmatprep.subr.bf16.mxu0 0
  %100 = vmatpush1.bf16.msra.mxu0 0
  %101 = vmatprep.subr.bf16.mxu0 0
  %102 = vmatpush1.bf16.msra.mxu0 0
  %103 = vmatprep.subr.bf16.mxu0 0
  %104 = vmatpush1.bf16.msra.mxu0 0
  %105 = vmatprep.subr.bf16.mxu0 0
  %106 = vmatpush1.bf16.msra.mxu0 0
  %107 = vmatprep.subr.bf16.mxu0 0
  %108 = vmatpush1.bf16.msra.mxu0 0
  %109 = vmatprep.subr.bf16.mxu0 0
  %110 = vmatpush1.bf16.msra.mxu0 0
  %111 = vmatprep.subr.bf16.mxu0 0
  %112 = vmatpush1.bf16.msra.mxu0 0
  %113 = vmatprep.subr.bf16.mxu0 0
  %114 = vmatpush1.bf16.msra.mxu0 0
  %115 = vmatprep.subr.bf16.mxu0 0
  %116 = vmatpush1.bf16.msra.mxu0 0
  %117 = vmatprep.subr.bf16.mxu0 0
  %118 = vmatpush1.bf16.msra.mxu0 0
  %119 = vmatprep.subr.bf16.mxu0 0
  %120 = vmatpush1.bf16.msra.mxu0 0
  %121 = vmatprep.mubr.bf16.mxu0 0
  %122 = vmatmul.mubr.bf16.gmra.mrb[0].mxu0 %v87
  %v123 = vpop.f32.mrb[0].mxu0
  %v124 = vadd.f32 %v59, %v123
  %v125 = vpop.f32.mrb[0].mxu0
  %v126 = vpop.f32.mrb[0].mxu0
  %v127 = vpop.f32.mrb[0].mxu0
  %128 = vdwg.mxu0
  %v129 = vld [vmem:[%s0] sm:$0x1]
  %v130 = vld [vmem:[%s7] sm:$0xf]
  %v131 = vld [vmem:[%s3] sm:$0xf]
  %v132 = vld [vmem:[%s3 + $0x4] sm:$0xf]
  %v133 = vunpack.c.l.bf16 %v131
  %v134 = vunpack.c.l.bf16 %v132
  %v137 = vcombine.high %v133, %v133
  %v138 = vcombine.high %v134, %v134
  %vm141 = vcmask 1042432
  %v142 = vsel %vm141, %v133, 0.0
  %v143 = vsel %vm141, %v137, 0.0
  %v144 = vadd.f32 %v142, %v143
  %145 = vadd.xlane.f32.xlu0 %v144
  %v146 = vpop.xlane.xlu0 %145
  %v147 = vsel %vm141, %v134, 0.0
  %v148 = vsel %vm141, %v138, 0.0
  %v149 = vadd.f32 %v147, %v148
  %150 = vadd.xlane.f32.xlu0 %v149
  %v151 = vpop.xlane.xlu0 %150
  %v152 = vrcp.pop 256.0
  %v153 = vmul.f32 %v146, %v152
  %v154 = vmul.f32 %v151, %v152
  %v155 = vpack.c.bf16 %v153, %v153
  %v156 = vpack.c.bf16 %v154, %v154
  %v157 = vld [vmem:[%s8] sm:$0x3]
  %v160 = vunpack.c.l.b16 %v155
  %v161 = vunpack.c.l.b16 %v156
  %v162 = vlaneseq
  %v163 = vand.u32 %v162, 127
  %v164 = vlaneseq
  %v165 = vshrl.u32 %v164, 7
  %v166 = vsub.s32 %v163, %v165
  %v167 = vrot.slane %v160, %v166
  %v168 = vlaneseq
  %v169 = vshrl.u32 %v168, 7
  %v170 = vsub.s32 %v163, %v169
  %v171 = vrot.slane %v161, %v170
  %vm172 = vcmask 1041409
  %v173 = vsel %vm172, %v171, %v167
  %v174 = vpack.c.b16 %v173, %v173
  %vm175 = vcmask 23552
  %v177 = vsel %vm175, %v174, 0
  %vm179 = vcmask 1040384
  %vm180 = vcmask 1041408
  %v181 = vsel %vm179, 4294967295, 65535
  %v182 = vsel %vm180, %v181, 0
  %v184 = vand.u32 %v157, %v182
  %186 = vmatprep.subr.bf16.mxu0 0
  %187 = vmatpush1.bf16.msra.mxu0 %v184
  %188 = vmatprep.subr.bf16.mxu0 0
  %189 = vmatpush1.bf16.msra.mxu0 0
  %190 = vmatprep.subr.bf16.mxu0 0
  %191 = vmatpush1.bf16.msra.mxu0 0
  %192 = vmatprep.subr.bf16.mxu0 0
  %193 = vmatpush1.bf16.msra.mxu0 0
  %194 = vmatprep.subr.bf16.mxu0 0
  %195 = vmatpush1.bf16.msra.mxu0 0
  %196 = vmatprep.subr.bf16.mxu0 0
  %197 = vmatpush1.bf16.msra.mxu0 0
  %198 = vmatprep.subr.bf16.mxu0 0
  %199 = vmatpush1.bf16.msra.mxu0 0
  %200 = vmatprep.subr.bf16.mxu0 0
  %201 = vmatpush1.bf16.msra.mxu0 0
  %202 = vmatprep.subr.bf16.mxu0 0
  %203 = vmatpush1.bf16.msra.mxu0 0
  %204 = vmatprep.subr.bf16.mxu0 0
  %205 = vmatpush1.bf16.msra.mxu0 0
  %206 = vmatprep.subr.bf16.mxu0 0
  %207 = vmatpush1.bf16.msra.mxu0 0
  %208 = vmatprep.subr.bf16.mxu0 0
  %209 = vmatpush1.bf16.msra.mxu0 0
  %210 = vmatprep.subr.bf16.mxu0 0
  %211 = vmatpush1.bf16.msra.mxu0 0
  %212 = vmatprep.subr.bf16.mxu0 0
  %213 = vmatpush1.bf16.msra.mxu0 0
  %214 = vmatprep.subr.bf16.mxu0 0
  %215 = vmatpush1.bf16.msra.mxu0 0
  %216 = vmatprep.subr.bf16.mxu0 0
  %217 = vmatpush1.bf16.msra.mxu0 0
  %218 = vmatprep.mubr.bf16.mxu0 0
  %219 = vmatmul.mubr.bf16.gmra.mrb[0].mxu0 %v177
  %v220 = vpop.f32.mrb[0].mxu0
  %v221 = vadd.f32 0.0, %v220
  %v222 = vpop.f32.mrb[0].mxu0
  %v223 = vpop.f32.mrb[0].mxu0
  %v224 = vpop.f32.mrb[0].mxu0
  %225 = vdwg.mxu0
  %vm226 = vcmask 64512
  %v228 = vsel %vm226, %v129, 0
  %vm230 = vcmask 1043456
  %v232 = vsel %vm230, %v130, 0
  %234 = vmatprep.subr.bf16.mxu0 0
  %235 = vmatpush1.bf16.msra.mxu0 %v232
  %236 = vmatprep.subr.bf16.mxu0 0
  %237 = vmatpush1.bf16.msra.mxu0 0
  %238 = vmatprep.subr.bf16.mxu0 0
  %239 = vmatpush1.bf16.msra.mxu0 0
  %240 = vmatprep.subr.bf16.mxu0 0
  %241 = vmatpush1.bf16.msra.mxu0 0
  %242 = vmatprep.subr.bf16.mxu0 0
  %243 = vmatpush1.bf16.msra.mxu0 0
  %244 = vmatprep.subr.bf16.mxu0 0
  %245 = vmatpush1.bf16.msra.mxu0 0
  %246 = vmatprep.subr.bf16.mxu0 0
  %247 = vmatpush1.bf16.msra.mxu0 0
  %248 = vmatprep.subr.bf16.mxu0 0
  %249 = vmatpush1.bf16.msra.mxu0 0
  %250 = vmatprep.subr.bf16.mxu0 0
  %251 = vmatpush1.bf16.msra.mxu0 0
  %252 = vmatprep.subr.bf16.mxu0 0
  %253 = vmatpush1.bf16.msra.mxu0 0
  %254 = vmatprep.subr.bf16.mxu0 0
  %255 = vmatpush1.bf16.msra.mxu0 0
  %256 = vmatprep.subr.bf16.mxu0 0
  %257 = vmatpush1.bf16.msra.mxu0 0
  %258 = vmatprep.subr.bf16.mxu0 0
  %259 = vmatpush1.bf16.msra.mxu0 0
  %260 = vmatprep.subr.bf16.mxu0 0
  %261 = vmatpush1.bf16.msra.mxu0 0
  %262 = vmatprep.subr.bf16.mxu0 0
  %263 = vmatpush1.bf16.msra.mxu0 0
  %264 = vmatprep.subr.bf16.mxu0 0
  %265 = vmatpush1.bf16.msra.mxu0 0
  %266 = vmatprep.mubr.bf16.mxu0 0
  %267 = vmatmul.mubr.bf16.gmra.mrb[0].mxu0 %v228
  %v268 = vpop.f32.mrb[0].mxu0
  %v269 = vadd.f32 %v221, %v268
  %v270 = vpop.f32.mrb[0].mxu0
  %v271 = vpop.f32.mrb[0].mxu0
  %v272 = vpop.f32.mrb[0].mxu0
  %273 = vdwg.mxu0
  %v274 = vld [vmem:[%s4] sm:$0xf]
  %v275 = vld [vmem:[%s4 + $0x4] sm:$0xf]
  %v276 = vunpack.c.l.bf16 %v274
  %v277 = vunpack.c.l.bf16 %v275
  %v280 = vcombine.high %v276, %v276
  %v281 = vcombine.high %v277, %v277
  %v284 = vsel %vm141, %v276, 0.0
  %v285 = vsel %vm141, %v280, 0.0
  %v286 = vadd.f32 %v284, %v285
  %287 = vadd.xlane.f32.xlu0 %v286
  %v288 = vpop.xlane.xlu0 %287
  %v289 = vsel %vm141, %v277, 0.0
  %v290 = vsel %vm141, %v281, 0.0
  %v291 = vadd.f32 %v289, %v290
  %292 = vadd.xlane.f32.xlu0 %v291
  %v293 = vpop.xlane.xlu0 %292
  %v294 = vmul.f32 %v288, %v152
  %v295 = vmul.f32 %v293, %v152
  %v296 = vpack.c.bf16 %v294, %v294
  %v297 = vpack.c.bf16 %v295, %v295
  %v298 = vld [vmem:[%s9] sm:$0x3]
  %v301 = vunpack.c.l.b16 %v296
  %v302 = vunpack.c.l.b16 %v297
  %v303 = vlaneseq
  %v304 = vshrl.u32 %v303, 7
  %v305 = vsub.s32 %v163, %v304
  %v306 = vrot.slane %v301, %v305
  %v307 = vlaneseq
  %v308 = vshrl.u32 %v307, 7
  %v309 = vsub.s32 %v163, %v308
  %v310 = vrot.slane %v302, %v309
  %v311 = vsel %vm172, %v310, %v306
  %v312 = vpack.c.b16 %v311, %v311
  %v314 = vsel %vm175, %v312, 0
  %v317 = vand.u32 %v298, %v182
  %319 = vmatprep.subr.bf16.mxu0 0
  %320 = vmatpush1.bf16.msra.mxu0 %v317
  %321 = vmatprep.subr.bf16.mxu0 0
  %322 = vmatpush1.bf16.msra.mxu0 0
  %323 = vmatprep.subr.bf16.mxu0 0
  %324 = vmatpush1.bf16.msra.mxu0 0
  %325 = vmatprep.subr.bf16.mxu0 0
  %326 = vmatpush1.bf16.msra.mxu0 0
  %327 = vmatprep.subr.bf16.mxu0 0
  %328 = vmatpush1.bf16.msra.mxu0 0
  %329 = vmatprep.subr.bf16.mxu0 0
  %330 = vmatpush1.bf16.msra.mxu0 0
  %331 = vmatprep.subr.bf16.mxu0 0
  %332 = vmatpush1.bf16.msra.mxu0 0
  %333 = vmatprep.subr.bf16.mxu0 0
  %334 = vmatpush1.bf16.msra.mxu0 0
  %335 = vmatprep.subr.bf16.mxu0 0
  %336 = vmatpush1.bf16.msra.mxu0 0
  %337 = vmatprep.subr.bf16.mxu0 0
  %338 = vmatpush1.bf16.msra.mxu0 0
  %339 = vmatprep.subr.bf16.mxu0 0
  %340 = vmatpush1.bf16.msra.mxu0 0
  %341 = vmatprep.subr.bf16.mxu0 0
  %342 = vmatpush1.bf16.msra.mxu0 0
  %343 = vmatprep.subr.bf16.mxu0 0
  %344 = vmatpush1.bf16.msra.mxu0 0
  %345 = vmatprep.subr.bf16.mxu0 0
  %346 = vmatpush1.bf16.msra.mxu0 0
  %347 = vmatprep.subr.bf16.mxu0 0
  %348 = vmatpush1.bf16.msra.mxu0 0
  %349 = vmatprep.subr.bf16.mxu0 0
  %350 = vmatpush1.bf16.msra.mxu0 0
  %351 = vmatprep.mubr.bf16.mxu0 0
  %352 = vmatmul.mubr.bf16.gmra.mrb[0].mxu0 %v314
  %v353 = vpop.f32.mrb[0].mxu0
  %v354 = vadd.f32 0.0, %v353
  %v355 = vpop.f32.mrb[0].mxu0
  %v356 = vpop.f32.mrb[0].mxu0
  %v357 = vpop.f32.mrb[0].mxu0
  %358 = vdwg.mxu0
  %v359 = vadd.f32 %v269, %v354
  %v360 = vld [vmem:[%s10] sm:$0x1]
  %v362 = vlaneseq
  %v363 = vshrl.u32 %v362, 7
  %v364 = vsub.s32 0, %v363
  %v365 = vrot.slane %v360, %v364
  %v367 = vadd.f32 %v359, %v365
  %v368 = vadd.f32 %v367, %v124
  %v369 = vtanh.pop %v368
  %v370 = vpack.c.bf16 %v369, %v369
  %v371 = vld [vmem:[%s11] sm:$0xf]
  %v372 = vld [vmem:[%s11 + $0x4] sm:$0xf]
  %v373 = vld [vmem:[%s11 + $0x8] sm:$0xf]
  %v374 = vld [vmem:[%s11 + $0xc] sm:$0xf]
  %v375 = vld [vmem:[%s12] sm:$0x1]
  %v377 = vlaneseq
  %v378 = vshrl.u32 %v377, 7
  %v379 = vsub.s32 0, %v378
  %v380 = vrot.slane %v375, %v379
  %v386 = vunpack.c.l.b16 %v371
  %v387 = vunpack.c.l.b16 %v372
  %v388 = vunpack.c.l.b16 %v373
  %v389 = vunpack.c.l.b16 %v374
  %v390 = vpack.c.b16 %v387, %v386
  %v391 = vpack.c.b16 %v389, %v388
  %vm394 = vcmask 261120
  %v396 = vsel %vm394, %v370, 0
  %398 = vmatprep.subr.bf16.mxu0 0
  %399 = vmatpush1.bf16.msra.mxu0 %v390
  %400 = vmatprep.subr.bf16.mxu0 0
  %401 = vmatpush1.bf16.msra.mxu0 %v391
  %402 = vmatprep.subr.bf16.mxu0 0
  %403 = vmatpush1.bf16.msra.mxu0 0
  %404 = vmatprep.subr.bf16.mxu0 0
  %405 = vmatpush1.bf16.msra.mxu0 0
  %406 = vmatprep.subr.bf16.mxu0 0
  %407 = vmatpush1.bf16.msra.mxu0 0
  %408 = vmatprep.subr.bf16.mxu0 0
  %409 = vmatpush1.bf16.msra.mxu0 0
  %410 = vmatprep.subr.bf16.mxu0 0
  %411 = vmatpush1.bf16.msra.mxu0 0
  %412 = vmatprep.subr.bf16.mxu0 0
  %413 = vmatpush1.bf16.msra.mxu0 0
  %414 = vmatprep.subr.bf16.mxu0 0
  %415 = vmatpush1.bf16.msra.mxu0 0
  %416 = vmatprep.subr.bf16.mxu0 0
  %417 = vmatpush1.bf16.msra.mxu0 0
  %418 = vmatprep.subr.bf16.mxu0 0
  %419 = vmatpush1.bf16.msra.mxu0 0
  %420 = vmatprep.subr.bf16.mxu0 0
  %421 = vmatpush1.bf16.msra.mxu0 0
  %422 = vmatprep.subr.bf16.mxu0 0
  %423 = vmatpush1.bf16.msra.mxu0 0
  %424 = vmatprep.subr.bf16.mxu0 0
  %425 = vmatpush1.bf16.msra.mxu0 0
  %426 = vmatprep.subr.bf16.mxu0 0
  %427 = vmatpush1.bf16.msra.mxu0 0
  %428 = vmatprep.subr.bf16.mxu0 0
  %429 = vmatpush1.bf16.msra.mxu0 0
  %430 = vmatprep.mubr.bf16.mxu0 0
  %431 = vmatmul.mubr.bf16.gmra.mrb[0].mxu0 %v396
  %v432 = vpop.f32.mrb[0].mxu0
  %v433 = vadd.f32 %v380, %v432
  %v434 = vpop.f32.mrb[0].mxu0
  %v435 = vpop.f32.mrb[0].mxu0
  %v436 = vpop.f32.mrb[0].mxu0
  %437 = vdwg.mxu0
  %v438 = vadd.f32 %v433, 1.0
  %v439 = vmul.f32 %v433, %v433
  %441 = vrot.lane.b32.xlu0 %v439, 16
  %v442 = vpop.permute.xlu0 %441
  %v444 = vsub.f32 %v438, %v442
  %v445 = vmul.f32 %v433, 1.442695
  %v446 = vpow.pop %v445
  %v447 = vsub.f32 %v444, %v446
  %v448 = vmul.f32 %v447, -0.5
  %450 = vrot.lane.b32.xlu0 %v448, 80
  %v451 = vpop.permute.xlu0 %450
  %vm453 = vcmask 123904
  %v454 = vsel %vm453, %v451, 0.0
  %455 = vadd.xlane.f32.xlu0 %v454
  %v456 = vpop.xlane.xlu0 %455
  %v457 = vsel %vm180, %v456, 0.0
  %v458 = vrot.slane %v457, 4
  %v459 = vadd.f32 %v457, %v458
  %v460 = vrot.slane %v459, 2
  %v461 = vadd.f32 %v459, %v460
  %v462 = vrot.slane %v461, 1
  %v463 = vadd.f32 %v461, %v462
  %v464 = vrcp.pop 2.0
  %v465 = vmul.f32 %v463, %v464
  %v466 = vld [vmem:[%s2] sm:$0x3]
  %v467 = vsub.f32 %v466, %v433
  %v468 = vand.u32 2147483647, %v467
  %vm469 = vcmask 254976
  %v470 = vsel %vm469, %v468, 0.0
  %471 = vadd.xlane.f32.xlu0 %v470
  %v472 = vpop.xlane.xlu0 %471
  %v473 = vrcp.pop 32.0
  %v474 = vmul.f32 %v472, %v473
  %v475 = vsel %vm180, %v474, 0.0
  %v476 = vrot.slane %v475, 4
  %v477 = vadd.f32 %v475, %v476
  %v478 = vrot.slane %v477, 2
  %v479 = vadd.f32 %v477, %v478
  %v480 = vrot.slane %v479, 1
  %v481 = vadd.f32 %v479, %v480
  %v482 = vmul.f32 %v481, %v464
  %v483 = vmul.f32 %v465, 10.0
  %v484 = vadd.f32 %v482, %v483
  %vm485 = vcmp.eq.s32.totalorder %v163, 0
  %v486 = vsel %vm485, %v482, 0.0
  %vm487 = vcmp.eq.s32.totalorder %v163, 1
  %v488 = vsel %vm487, %v465, 0.0
  %v489 = vadd.f32 %v486, %v488
  %vm490 = vcmp.eq.s32.totalorder %v163, 2
  %v491 = vsel %vm490, %v484, 0.0
  %v492 = vadd.f32 %v489, %v491
  %vm493 = vcmask 57344
  %494 = vst.msk [vmem:[%s13] sm:$0x1] %vm493, %v492
  // Predicated region
  $region54: #{_train_impl.1} parent=0 // pred_check
    _
  $region55: #{_train_impl.1} parent=0 // pred_check_branch
    %496 = sbr.rel (0) target = $region57
  $region56: #{_train_impl.1} parent=0 // pred_region
    _
  $region57: #{_train_impl.1} parent=0 // pred_fallthru
    _
  // Predicated region
  $region58: #{_train_impl.1} parent=0 // pred_check
    _
  $region59: #{_train_impl.1} parent=0 // pred_check_branch
    %498 = sbr.rel (0) target = $region61
  $region60: #{_train_impl.1} parent=0 // pred_region
    _
  $region61: #{_train_impl.1} parent=0 // pred_fallthru
    _

</llo_original>
